<compile_context>
chip_gen: v6e
topology: v6e:2x2x1
jax: 0.10.0
libtpu: 0.0.40
codegen_flags: <defaults>
</compile_context>

<pallas_src>
import jax
import jax.numpy as jnp
import numpy as np
from jax.experimental import pallas as pl
from jax.experimental.pallas import tpu as pltpu


def _mf_kernel(uid_ref, iid_ref, utabT_ref, itabT_ref, out_ref):
    # uid_ref / iid_ref : (1, 1, TB) int32  -- ids for this batch tile
    # utabT_ref         : (E_pad, NU_pad) f32  -- user table, transposed, VMEM-resident
    # itabT_ref         : (E_pad, NI_pad) f32  -- item table, transposed, VMEM-resident
    # out_ref           : (1, 1, TB) f32       -- lane-dense per-tile output
    uid = uid_ref[0]                      # (1, TB) int32
    iid = iid_ref[0]                      # (1, TB) int32
    nu = utabT_ref.shape[1]
    ni = itabT_ref.shape[1]
    tb = uid.shape[1]

    # One-hot "gather" masks: onehot[n, b] = (ids[b] == n).  Batch stays in lanes.
    u_onehot = (jax.lax.broadcasted_iota(jnp.int32, (nu, tb), 0) == uid).astype(jnp.float32)
    i_onehot = (jax.lax.broadcasted_iota(jnp.int32, (ni, tb), 0) == iid).astype(jnp.float32)

    # Embedding lookup on the MXU: (E_pad, N_pad) @ (N_pad, TB) -> (E_pad, TB).
    u_emb = jnp.dot(utabT_ref[...], u_onehot, preferred_element_type=jnp.float32)
    i_emb = jnp.dot(itabT_ref[...], i_onehot, preferred_element_type=jnp.float32)

    # Elementwise interaction (VPU) + reduce over the embedding (sublane) axis (XLU).
    prod = u_emb * i_emb                                   # (E_pad, TB)
    out_ref[...] = jnp.sum(prod, axis=0, keepdims=True)[None]   # (1, 1, TB)


def _round_up(x, m):
    return (x + m - 1) // m * m


def matrix_factorization_forward(user_ids, item_ids, user_table, item_table, *, tb=128):
    """user_ids, item_ids: int (B,); *_table: f32 (N, E). Returns f32 (B,)."""
    B = user_ids.shape[0]
    NU, E = user_table.shape
    NI, E_i = item_table.shape
    assert E == E_i

    e_pad = _round_up(E, 8)        # embedding dim -> sublanes in-kernel
    nu_pad = _round_up(NU, 128)    # table rows -> lanes of the transposed table
    ni_pad = _round_up(NI, 128)
    b_pad = _round_up(B, tb)
    num_tiles = b_pad // tb

    # VMEM-resident fast path only (plenty for the shipped sizes).
    table_bytes = (e_pad * nu_pad + e_pad * ni_pad) * 4
    if table_bytes > 24 * 1024 * 1024:
        # TODO(synk): streamed manual-DMA row-gather path for large embedding tables.
        raise NotImplementedError("embedding tables too large for the VMEM-resident fast path")

    # Transposed + zero-padded tables: (E_pad, N_pad).  Zero pad rows/cols are inert.
    utabT = jnp.zeros((e_pad, nu_pad), jnp.float32).at[:E, :NU].set(
        user_table.astype(jnp.float32).T)
    itabT = jnp.zeros((e_pad, ni_pad), jnp.float32).at[:E, :NI].set(
        item_table.astype(jnp.float32).T)

    # Pad ids to a whole number of batch tiles; layout (num_tiles, 1, TB) so each
    # grid step sees a lane-dense (1, TB) id block.
    uid = jnp.zeros((b_pad,), jnp.int32).at[:B].set(user_ids.astype(jnp.int32))
    iid = jnp.zeros((b_pad,), jnp.int32).at[:B].set(item_ids.astype(jnp.int32))
    uid = uid.reshape(num_tiles, 1, tb)
    iid = iid.reshape(num_tiles, 1, tb)

    out = pl.pallas_call(
        _mf_kernel,
        out_shape=jax.ShapeDtypeStruct((num_tiles, 1, tb), jnp.float32),
        grid=(num_tiles,),
        in_specs=[
            pl.BlockSpec((1, 1, tb), lambda t: (t, 0, 0)),        # user ids tile
            pl.BlockSpec((1, 1, tb), lambda t: (t, 0, 0)),        # item ids tile
            pl.BlockSpec((e_pad, nu_pad), lambda t: (0, 0)),      # full user table (resident)
            pl.BlockSpec((e_pad, ni_pad), lambda t: (0, 0)),      # full item table (resident)
        ],
        out_specs=pl.BlockSpec((1, 1, tb), lambda t: (t, 0, 0)),  # lane-dense output
        compiler_params=pltpu.CompilerParams(
            dimension_semantics=("parallel",),                    # independent batch tiles
        ),
    )(uid, iid, utabT, itabT)

    return out.reshape(b_pad)[:B]                                 # (B,) == torch.sum(dim=1)


if __name__ == "__main__":
    # Deterministic synthetic parameters (nn.Embedding shapes from __init__;
    # self.fc is unused by forward() and therefore omitted).
    num_users = 16
    num_items = 12
    embedding_size = 50       # module default
    batch = 200               # exercises 2 batch tiles of 128 (with padding)

    key = jax.random.PRNGKey(0)
    k_u, k_i, k_uid, k_iid = jax.random.split(key, 4)

    user_table = jax.random.normal(k_u, (num_users, embedding_size), dtype=jnp.float32)
    item_table = jax.random.normal(k_i, (num_items, embedding_size), dtype=jnp.float32)
    user_ids = jax.random.randint(k_uid, (batch,), 0, num_users, dtype=jnp.int32)
    item_ids = jax.random.randint(k_iid, (batch,), 0, num_items, dtype=jnp.int32)

    out = matrix_factorization_forward(user_ids, item_ids, user_table, item_table)
    out = jax.block_until_ready(out)

    # Pure-JAX reference check.
    ref = jnp.sum(user_table[user_ids] * item_table[item_ids], axis=1)
    np.testing.assert_allclose(np.asarray(out), np.asarray(ref), rtol=1e-5, atol=1e-5)

    print("KERNEL_OK")
</pallas_src>

<mosaic_0001>
module attributes {stable_mosaic.version = 11 : i64} {
  func.func @_mf_kernel(%arg0: i32, %arg1: memref<1x1x128xi32, #tpu.memory_space<vmem>>, %arg2: memref<1x1x128xi32, #tpu.memory_space<vmem>>, %arg3: memref<56x128xf32, #tpu.memory_space<vmem>>, %arg4: memref<56x128xf32, #tpu.memory_space<vmem>>, %arg5: memref<1x1x128xf32, #tpu.memory_space<vmem>>) attributes {dimension_semantics = [#tpu.dimension_semantics<parallel>], iteration_bounds = array<i64: 2>, scalar_prefetch = 0 : i64, scratch_operands = 0 : i64, tpu.core_type = #tpu.core_type<tc>, window_params = [{transform_indices = @transform_0, window_bounds = array<i64: 1, 1, 128>}, {transform_indices = @transform_1, window_bounds = array<i64: 1, 1, 128>}, {pipeline_mode = #tpu.pipeline_mode<synchronous>, transform_indices = @transform_2, window_bounds = array<i64: 56, 128>}, {pipeline_mode = #tpu.pipeline_mode<synchronous>, transform_indices = @transform_3, window_bounds = array<i64: 56, 128>}, {transform_indices = @transform_4, window_bounds = array<i64: 1, 1, 128>}]} {
    %c0 = arith.constant 0 : index
    %c0_0 = arith.constant 0 : index
    %c0_1 = arith.constant 0 : index
    %0 = vector.load %arg1[%c0, %c0_0, %c0_1] : memref<1x1x128xi32, #tpu.memory_space<vmem>>, vector<1x1x128xi32>
    %1 = vector.shape_cast %0 : vector<1x1x128xi32> to vector<1x128xi32>
    %c0_2 = arith.constant 0 : index
    %c0_3 = arith.constant 0 : index
    %c0_4 = arith.constant 0 : index
    %2 = vector.load %arg2[%c0_2, %c0_3, %c0_4] : memref<1x1x128xi32, #tpu.memory_space<vmem>>, vector<1x1x128xi32>
    %3 = vector.shape_cast %2 : vector<1x1x128xi32> to vector<1x128xi32>
    %4 = tpu.iota {dimensions = array<i32: 0>} : vector<128x128xi32>
    %5 = vector.broadcast %1 : vector<1x128xi32> to vector<128x128xi32>
    %6 = arith.cmpi eq, %4, %5 : vector<128x128xi32>
    %7 = arith.extui %6 : vector<128x128xi1> to vector<128x128xi32>
    %8 = arith.sitofp %7 : vector<128x128xi32> to vector<128x128xf32>
    %9 = tpu.iota {dimensions = array<i32: 0>} : vector<128x128xi32>
    %10 = vector.broadcast %3 : vector<1x128xi32> to vector<128x128xi32>
    %11 = arith.cmpi eq, %9, %10 : vector<128x128xi32>
    %12 = arith.extui %11 : vector<128x128xi1> to vector<128x128xi32>
    %13 = arith.sitofp %12 : vector<128x128xi32> to vector<128x128xf32>
    %c0_5 = arith.constant 0 : index
    %c0_6 = arith.constant 0 : index
    %14 = vector.load %arg3[%c0_5, %c0_6] : memref<56x128xf32, #tpu.memory_space<vmem>>, vector<56x128xf32>
    %cst = arith.constant dense<0.000000e+00> : vector<56x128xf32>
    %15 = tpu.matmul %14, %8, %cst {dimension_numbers = #tpu.dot_dimension_numbers<[1], [0], [0], [1], [0, 0, 1, 1], [], []>} : vector<56x128xf32>, vector<128x128xf32>, vector<56x128xf32> -> vector<56x128xf32>
    %c0_7 = arith.constant 0 : index
    %c0_8 = arith.constant 0 : index
    %16 = vector.load %arg4[%c0_7, %c0_8] : memref<56x128xf32, #tpu.memory_space<vmem>>, vector<56x128xf32>
    %cst_9 = arith.constant dense<0.000000e+00> : vector<56x128xf32>
    %17 = tpu.matmul %16, %13, %cst_9 {dimension_numbers = #tpu.dot_dimension_numbers<[1], [0], [0], [1], [0, 0, 1, 1], [], []>} : vector<56x128xf32>, vector<128x128xf32>, vector<56x128xf32> -> vector<56x128xf32>
    %18 = arith.mulf %15, %17 : vector<56x128xf32>
    %cst_10 = arith.constant dense<0.000000e+00> : vector<128xf32>
    %19 = vector.multi_reduction <add>, %18, %cst_10 [0] : vector<56x128xf32> to vector<128xf32>
    %20 = vector.shape_cast %19 : vector<128xf32> to vector<1x128xf32>
    %21 = vector.shape_cast %20 : vector<1x128xf32> to vector<1x1x128xf32>
    %c0_11 = arith.constant 0 : index
    %c0_12 = arith.constant 0 : index
    %c0_13 = arith.constant 0 : index
    %22 = vector.load %arg5[%c0_11, %c0_12, %c0_13] : memref<1x1x128xf32, #tpu.memory_space<vmem>>, vector<1x1x128xf32>
    tpu.vector_store %arg5[%c0_11, %c0_12, %c0_13], %21 {strides = array<i32>} : memref<1x1x128xf32, #tpu.memory_space<vmem>>, vector<1x1x128xf32>,
    return
  }
  func.func @transform_0(%arg0: i32) -> (i32, i32, i32) {
    %c0_i32 = arith.constant 0 : i32
    %c0_i32_0 = arith.constant 0 : i32
    %c0_i32_1 = arith.constant 0 : i32
    return %arg0, %c0_i32, %c0_i32_0 : i32, i32, i32
  }
  func.func @transform_1(%arg0: i32) -> (i32, i32, i32) {
    %c0_i32 = arith.constant 0 : i32
    %c0_i32_0 = arith.constant 0 : i32
    %c0_i32_1 = arith.constant 0 : i32
    return %arg0, %c0_i32, %c0_i32_0 : i32, i32, i32
  }
  func.func @transform_2(%arg0: i32) -> (i32, i32) {
    %c0_i32 = arith.constant 0 : i32
    %c0_i32_0 = arith.constant 0 : i32
    %c0_i32_1 = arith.constant 0 : i32
    return %c0_i32, %c0_i32_0 : i32, i32
  }
  func.func @transform_3(%arg0: i32) -> (i32, i32) {
    %c0_i32 = arith.constant 0 : i32
    %c0_i32_0 = arith.constant 0 : i32
    %c0_i32_1 = arith.constant 0 : i32
    return %c0_i32, %c0_i32_0 : i32, i32
  }
  func.func @transform_4(%arg0: i32) -> (i32, i32, i32) {
    %c0_i32 = arith.constant 0 : i32
    %c0_i32_0 = arith.constant 0 : i32
    %c0_i32_1 = arith.constant 0 : i32
    return %arg0, %c0_i32, %c0_i32_0 : i32, i32, i32
  }
}

</mosaic_0001>

<llo_original>
// kernel: tpu_custom_call.1
$region0: #{tpu_custom_call.1}
  #allocation0 [shape = 'u32[]', space=smem, size = 0x4, offset = 0x4, fixed_abs, tag = 'smem constant byte address 0x4 - core index']
  #allocation1 [shape = 'u32[144,128]{1,0:T(1,128)}', space=vmem, size = 0x12000, scoped, tag = 'internal scratch']
  %s0 = inlined_call_operand.hbm [shape: s32[2,1,128], index: 0, kind: input, shape index: {}]
  %s1 = inlined_call_operand.hbm [shape: s32[2,1,128], index: 1, kind: input, shape index: {}]
  %s2 = inlined_call_operand.hbm [shape: f32[56,128], index: 2, kind: input, shape index: {}]
  %s3 = inlined_call_operand.hbm [shape: f32[56,128], index: 3, kind: input, shape index: {}]
  %s4 = inlined_call_operand.hbm [shape: f32[2,1,128], index: 4, kind: output, shape index: {}]
  %s5 = sld [smem:[#allocation0]]
  $region65: #{tpu_custom_call.1} parent=0
    _
  %s7 = ssub.s32 1, %s5
  %s8 = scalar_select 0, %s7, %s5
  $region1: #{tpu_custom_call.1} parent=0
    #allocation2 [shape = 'u8[1024]{0}', space=vmem, size = 0x400, scoped, tag = 'input window, operand 0']
    #allocation3 [shape = 's32[2]{0}', space=sflag, size = 0x8, scoped, tag = 'scoped memory for tpu_custom_call.1']
    #allocation4 [shape = 's32[2]{0}', space=sflag, size = 0x8, scoped, tag = 'scoped memory for tpu_custom_call.1']
    #allocation5 [shape = 'u8[1024]{0}', space=vmem, size = 0x400, scoped, tag = 'input window, operand 1']
    #allocation6 [shape = 's32[2]{0}', space=sflag, size = 0x8, scoped, tag = 'scoped memory for tpu_custom_call.1']
    #allocation7 [shape = 'u8[28672]{0}', space=vmem, size = 0x7000, scoped, tag = 'input window, operand 2, single buffered']
    #allocation8 [shape = 'u8[28672]{0}', space=vmem, size = 0x7000, scoped, tag = 'input window, operand 3, single buffered']
    #allocation9 [shape = 's32[1]{0}', space=sflag, size = 0x4, scoped, tag = 'scoped memory for tpu_custom_call.1']
    #allocation10 [shape = 'u8[1024]{0}', space=vmem, size = 0x400, scoped, tag = 'output window, operand 0']
    %9 = vsyncpa [#allocation3], 0
    %s10 = scalar_lea.sflag [#allocation3], 1
    %11 = vsyncpa %s10, 0
    %12 = vsyncpa [#allocation6], 0
    %s13 = scalar_lea.sflag [#allocation6], 1
    %14 = vsyncpa %s13, 0
    %15 = vsyncpa [#allocation9], 0
    %16 = vsyncpa [#allocation4], 0
    %s17 = scalar_lea.sflag [#allocation4], 1
    %18 = vsyncpa %s17, 0
    loop: start=0, step=1, limit=4
    $region2: #{tpu_custom_call.1} parent=1 // loop_pre_header
      _
    $region3: #{tpu_custom_call.1} parent=1 // loop_header
      %s20 = sphi 0, %s24
      %p21 = scmp.ge.s32.totalorder %s20, 4
      %s30 = sphi 0, %s32
      %s33 = sphi 0, %s30
      %s34 = sphi 0, %s33
      %s50 = sphi 0, %s34
      %s56 = sphi 0, %s58
      %s59 = sphi 0, %s56
      %s60 = sphi 0, %s59
      %s76 = sphi 0, %s60
      %s80 = sphi 0, %s80
      %s82 = sphi 0, %s80
      %s83 = sphi 0, %s82
      %s97 = sphi 0, %s83
      %s101 = sphi 0, %s101
      %s103 = sphi 0, %s101
      %s104 = sphi 0, %s103
      %s118 = sphi 0, %s104
      %s124 = sphi 0, %s126
      %s127 = sphi 0, %s124
      %s128 = sphi 0, %s127
      %s144 = sphi 0, %s128
    $region4: #{tpu_custom_call.1} parent=1 // loop_header_branch
      %23 = sbr.rel (%p21) target = $region8
    $region5: #{tpu_custom_call.1} parent=1 // loop_body
      %s25 = ssub.s32 %s20, 1
      %s26 = ssub.s32 %s20, 2
      %s27 = sadd.s32 %s20, 1
      %s28 = ssub.s32 %s20, %s27
      %p29 = scmp.eq.s32.totalorder %s28, 0
      %s31 = sadd.s32 %s30, 1
      %s32 = scalar_select %p29, %s30, %s31
      %p35 = pneg %p29
      %p36 = scmp.eq.s32.totalorder %s20, 1
      %p37 = por %p35, %p36
      %p38 = scmp.ne.s32.totalorder %s30, %s33
      %p39 = scmp.eq.s32.totalorder %s20, 0
      %p40 = por %p38, %p39
      %p41 = scmp.ne.s32.totalorder %s30, %s33
      %p42 = scmp.eq.s32.totalorder %s25, 1
      %p43 = por %p41, %p42
      %p44 = scmp.ne.s32.totalorder %s33, %s34
      %p45 = scmp.eq.s32.totalorder %s25, 0
      %p46 = por %p44, %p45
      %p47 = scmp.ne.s32.totalorder %s33, %s34
      %p48 = scmp.eq.s32.totalorder %s26, 1
      %p49 = por %p47, %p48
      %p51 = scmp.ne.s32.totalorder %s34, %s50
      %p52 = scmp.eq.s32.totalorder %s26, 0
      %p53 = por %p51, %p52
      %s54 = ssub.s32 %s20, %s27
      %p55 = scmp.eq.s32.totalorder %s54, 0
      %s57 = sadd.s32 %s56, 1
      %s58 = scalar_select %p55, %s56, %s57
      %p61 = pneg %p55
      %p62 = scmp.eq.s32.totalorder %s20, 1
      %p63 = por %p61, %p62
      %p64 = scmp.ne.s32.totalorder %s56, %s59
      %p65 = scmp.eq.s32.totalorder %s20, 0
      %p66 = por %p64, %p65
      %p67 = scmp.ne.s32.totalorder %s56, %s59
      %p68 = scmp.eq.s32.totalorder %s25, 1
      %p69 = por %p67, %p68
      %p70 = scmp.ne.s32.totalorder %s59, %s60
      %p71 = scmp.eq.s32.totalorder %s25, 0
      %p72 = por %p70, %p71
      %p73 = scmp.ne.s32.totalorder %s59, %s60
      %p74 = scmp.eq.s32.totalorder %s26, 1
      %p75 = por %p73, %p74
      %p77 = scmp.ne.s32.totalorder %s60, %s76
      %p78 = scmp.eq.s32.totalorder %s26, 0
      %p79 = por %p77, %p78
      %s81 = sadd.s32 %s80, 1
      %p84 = scmp.eq.s32.totalorder %s20, 1
      %p85 = scmp.ne.s32.totalorder %s80, %s82
      %p86 = scmp.eq.s32.totalorder %s20, 0
      %p87 = por %p85, %p86
      %p88 = scmp.ne.s32.totalorder %s80, %s82
      %p89 = scmp.eq.s32.totalorder %s25, 1
      %p90 = por %p88, %p89
      %p91 = scmp.ne.s32.totalorder %s82, %s83
      %p92 = scmp.eq.s32.totalorder %s25, 0
      %p93 = por %p91, %p92
      %p94 = scmp.ne.s32.totalorder %s82, %s83
      %p95 = scmp.eq.s32.totalorder %s26, 1
      %p96 = por %p94, %p95
      %p98 = scmp.ne.s32.totalorder %s83, %s97
      %p99 = scmp.eq.s32.totalorder %s26, 0
      %p100 = por %p98, %p99
      %s102 = sadd.s32 %s101, 1
      %p105 = scmp.eq.s32.totalorder %s20, 1
      %p106 = scmp.ne.s32.totalorder %s101, %s103
      %p107 = scmp.eq.s32.totalorder %s20, 0
      %p108 = por %p106, %p107
      %p109 = scmp.ne.s32.totalorder %s101, %s103
      %p110 = scmp.eq.s32.totalorder %s25, 1
      %p111 = por %p109, %p110
      %p112 = scmp.ne.s32.totalorder %s103, %s104
      %p113 = scmp.eq.s32.totalorder %s25, 0
      %p114 = por %p112, %p113
      %p115 = scmp.ne.s32.totalorder %s103, %s104
      %p116 = scmp.eq.s32.totalorder %s26, 1
      %p117 = por %p115, %p116
      %p119 = scmp.ne.s32.totalorder %s104, %s118
      %p120 = scmp.eq.s32.totalorder %s26, 0
      %p121 = por %p119, %p120
      %s122 = ssub.s32 %s20, %s27
      %p123 = scmp.eq.s32.totalorder %s122, 0
      %s125 = sadd.s32 %s124, 1
      %s126 = scalar_select %p123, %s124, %s125
      %p129 = pneg %p123
      %p130 = scmp.eq.s32.totalorder %s20, 1
      %p131 = por %p129, %p130
      %p132 = scmp.ne.s32.totalorder %s124, %s127
      %p133 = scmp.eq.s32.totalorder %s20, 0
      %p134 = por %p132, %p133
      %p135 = scmp.ne.s32.totalorder %s124, %s127
      %p136 = scmp.eq.s32.totalorder %s25, 1
      %p137 = por %p135, %p136
      %p138 = scmp.ne.s32.totalorder %s127, %s128
      %p139 = scmp.eq.s32.totalorder %s25, 0
      %p140 = por %p138, %p139
      %p141 = scmp.ne.s32.totalorder %s127, %s128
      %p142 = scmp.eq.s32.totalorder %s26, 1
      %p143 = por %p141, %p142
      %p145 = scmp.ne.s32.totalorder %s128, %s144
      %p146 = scmp.eq.s32.totalorder %s26, 0
      %p147 = por %p145, %p146
      %p148 = scmp.le.s32.totalorder 1, %s20
      %p149 = scmp.lt.s32.totalorder %s20, 3
      %p150 = pnand %p148, %p149
      %p151 = pneg %p150
      // Predicated region
      $region9: #{tpu_custom_call.1} parent=5 // pred_check
        _
      $region10: #{tpu_custom_call.1} parent=5 // pred_check_branch
        %153 = sbr.rel (%p150) target = $region12
      $region11: #{tpu_custom_call.1} parent=5 // pred_region
        %s154 = ssub.s32 %s20, 1
        // Predicated region
        $region13: #{tpu_custom_call.1} parent=11 // pred_check
          %p155 = pneg %p93
        $region14: #{tpu_custom_call.1} parent=11 // pred_check_branch
          %157 = sbr.rel (%p155) target = $region16
        $region15: #{tpu_custom_call.1} parent=11 // pred_region
          %s159 = ssub.s32 896, 896
          %160 = vsyncadd [#allocation6], %s159
          %s161 = sshll.u32 [#allocation7], 4
          %s162 = int_to_ptr.vmem [resolvable:$true] %s161
          %167 = dma.hbm_to_vmem [thread:$0]  %s2, 896, %s162, [#allocation6], 128, 128, 8
        $region16: #{tpu_custom_call.1} parent=11 // pred_fallthru
          _
        // Predicated region
        $region17: #{tpu_custom_call.1} parent=11 // pred_check
          %p168 = pneg %p114
        $region18: #{tpu_custom_call.1} parent=11 // pred_check_branch
          %170 = sbr.rel (%p168) target = $region20
        $region19: #{tpu_custom_call.1} parent=11 // pred_region
          %s172 = ssub.s32 896, 896
          %173 = vsyncadd [#allocation9], %s172
          %s174 = sshll.u32 [#allocation8], 4
          %s175 = int_to_ptr.vmem [resolvable:$true] %s174
          %180 = dma.hbm_to_vmem [thread:$0]  %s3, 896, %s175, [#allocation9], 128, 128, 8
        $region20: #{tpu_custom_call.1} parent=11 // pred_fallthru
          _
      $region12: #{tpu_custom_call.1} parent=5 // pred_fallthru
        _
      %p181 = scmp.lt.s32.totalorder %s20, 2
      // Predicated region
      $region21: #{tpu_custom_call.1} parent=5 // pred_check
        %p182 = pneg %p181
      $region22: #{tpu_custom_call.1} parent=5 // pred_check_branch
        %184 = sbr.rel (%p182) target = $region24
      $region23: #{tpu_custom_call.1} parent=5 // pred_region
        // Predicated region
        $region25: #{tpu_custom_call.1} parent=23 // pred_check
          %p185 = pneg %p40
        $region26: #{tpu_custom_call.1} parent=23 // pred_check_branch
          %187 = sbr.rel (%p185) target = $region28
        $region27: #{tpu_custom_call.1} parent=23 // pred_region
          %s188 = sand.u32 %s30, 1
          %s189 = scalar_lea.sflag [#allocation3], %s188
          %s190 = sand.u32 %s30, 1
          %s191 = scalar_lea.vmem [#allocation2], %s190
          %s193 = ssub.s32 16, 16
          %194 = vsyncadd %s189, %s193
          %s195 = smul.addr %s20, 16
          %s196 = scalar_lea.hbm %s0, %s195
          %s198 = sshll.u32 %s191, 4
          %s199 = int_to_ptr.vmem [resolvable:$true] %s198
          %201 = dma.hbm_to_vmem [thread:$0]  %s196, 16, %s199, %s189
        $region28: #{tpu_custom_call.1} parent=23 // pred_fallthru
          _
        // Predicated region
        $region29: #{tpu_custom_call.1} parent=23 // pred_check
          %p202 = pneg %p66
        $region30: #{tpu_custom_call.1} parent=23 // pred_check_branch
          %204 = sbr.rel (%p202) target = $region32
        $region31: #{tpu_custom_call.1} parent=23 // pred_region
          %s205 = sand.u32 %s20, 1
          %s206 = scalar_lea.sflag [#allocation6], %s205
          %s207 = sand.u32 %s56, 1
          %s208 = scalar_lea.vmem [#allocation5], %s207
          %s210 = ssub.s32 16, 16
          %211 = vsyncadd %s206, %s210
          %s212 = smul.addr %s20, 16
          %s213 = scalar_lea.hbm %s1, %s212
          %s215 = sshll.u32 %s208, 4
          %s216 = int_to_ptr.vmem [resolvable:$true] %s215
          %218 = dma.hbm_to_vmem [thread:$0]  %s213, 16, %s216, %s206
        $region32: #{tpu_custom_call.1} parent=23 // pred_fallthru
          _
      $region24: #{tpu_custom_call.1} parent=5 // pred_fallthru
        _
      %p219 = scmp.le.s32.totalorder 1, %s20
      %p220 = scmp.lt.s32.totalorder %s20, 3
      %p221 = pnand %p219, %p220
      %p222 = pneg %p221
      // Predicated region
      $region33: #{tpu_custom_call.1} parent=5 // pred_check
        _
      $region34: #{tpu_custom_call.1} parent=5 // pred_check_branch
        %224 = sbr.rel (%p221) target = $region36
      $region35: #{tpu_custom_call.1} parent=5 // pred_region
        %s225 = ssub.s32 %s20, 1
        %s226 = sand.u32 %s33, 1
        %s227 = scalar_lea.sflag [#allocation3], %s226
        %s228 = sand.u32 %s33, 1
        %s229 = scalar_lea.vmem [#allocation2], %s228
        // Predicated region
        $region37: #{tpu_custom_call.1} parent=35 // pred_check
          %p230 = pneg %p46
        $region38: #{tpu_custom_call.1} parent=35 // pred_check_branch
          %232 = sbr.rel (%p230) target = $region40
        $region39: #{tpu_custom_call.1} parent=35 // pred_region
          %233 = dma.done %s227, 16
        $region40: #{tpu_custom_call.1} parent=35 // pred_fallthru
          _
        %s234 = sand.u32 %s25, 1
        %s235 = scalar_lea.sflag [#allocation6], %s234
        %s236 = sand.u32 %s59, 1
        %s237 = scalar_lea.vmem [#allocation5], %s236
        // Predicated region
        $region41: #{tpu_custom_call.1} parent=35 // pred_check
          %p238 = pneg %p72
        $region42: #{tpu_custom_call.1} parent=35 // pred_check_branch
          %240 = sbr.rel (%p238) target = $region44
        $region43: #{tpu_custom_call.1} parent=35 // pred_region
          %241 = dma.done %s235, 16
        $region44: #{tpu_custom_call.1} parent=35 // pred_fallthru
          _
        // Predicated region
        $region45: #{tpu_custom_call.1} parent=35 // pred_check
          %p242 = pneg %p93
        $region46: #{tpu_custom_call.1} parent=35 // pred_check_branch
          %244 = sbr.rel (%p242) target = $region48
        $region47: #{tpu_custom_call.1} parent=35 // pred_region
          %245 = dma.done [#allocation6], 896
        $region48: #{tpu_custom_call.1} parent=35 // pred_fallthru
          _
        // Predicated region
        $region49: #{tpu_custom_call.1} parent=35 // pred_check
          %p246 = pneg %p114
        $region50: #{tpu_custom_call.1} parent=35 // pred_check_branch
          %248 = sbr.rel (%p246) target = $region52
        $region51: #{tpu_custom_call.1} parent=35 // pred_region
          %249 = dma.done [#allocation9], 896
        $region52: #{tpu_custom_call.1} parent=35 // pred_fallthru
          _
        %s250 = sand.u32 %s33, 1
        %s251 = scalar_lea.sflag [#allocation3], %s250
        %s252 = sand.u32 %s33, 1
        %s253 = scalar_lea.vmem [#allocation2], %s252
        %p254 = pneg %p46
        %p255 = pneg %p43
        %s256 = sand.u32 %s25, 1
        %s257 = scalar_lea.sflag [#allocation6], %s256
        %s258 = sand.u32 %s59, 1
        %s259 = scalar_lea.vmem [#allocation5], %s258
        %p260 = pneg %p72
        %p261 = pneg %p69
        %p262 = pneg %p93
        %p263 = pneg %p90
        %p264 = pneg %p114
        %p265 = pneg %p111
        %p266 = pneg %p140
        %p267 = pneg %p137
        %s268 = sand.u32 %s127, 1
        %s269 = scalar_lea.sflag [#allocation4], %s268
        %s270 = sand.u32 %s127, 1
        %s271 = scalar_lea.vmem [#allocation10], %s270
        %v272 = vld [vmem:[%s229] sm:$0x1]
        %v273 = vld [vmem:[%s237] sm:$0x1]
        %v274 = vlaneseq
        %v275 = vshrl.u32 %v274, 7
        %v276 = vadd.s32 %v275, 8
        %v277 = vadd.s32 %v275, 16
        %v278 = vadd.s32 %v275, 24
        %v279 = vadd.s32 %v275, 32
        %v280 = vadd.s32 %v275, 40
        %v281 = vadd.s32 %v275, 48
        %v282 = vadd.s32 %v275, 56
        %v283 = vadd.s32 %v275, 64
        %v284 = vadd.s32 %v275, 72
        %v285 = vadd.s32 %v275, 80
        %v286 = vadd.s32 %v275, 88
        %v287 = vadd.s32 %v275, 96
        %v288 = vadd.s32 %v275, 104
        %v289 = vadd.s32 %v275, 112
        %v290 = vadd.s32 %v275, 120
        %v291 = vlaneseq
        %v292 = vshrl.u32 %v291, 7
        %v293 = vsub.s32 0, %v292
        %v294 = vrot.slane %v272, %v293
        %vm295 = vcmp.eq.s32.totalorder %v275, %v294
        %vm296 = vcmp.eq.s32.totalorder %v276, %v294
        %vm297 = vcmp.eq.s32.totalorder %v277, %v294
        %vm298 = vcmp.eq.s32.totalorder %v278, %v294
        %vm299 = vcmp.eq.s32.totalorder %v279, %v294
        %vm300 = vcmp.eq.s32.totalorder %v280, %v294
        %vm301 = vcmp.eq.s32.totalorder %v281, %v294
        %vm302 = vcmp.eq.s32.totalorder %v282, %v294
        %vm303 = vcmp.eq.s32.totalorder %v283, %v294
        %vm304 = vcmp.eq.s32.totalorder %v284, %v294
        %vm305 = vcmp.eq.s32.totalorder %v285, %v294
        %vm306 = vcmp.eq.s32.totalorder %v286, %v294
        %vm307 = vcmp.eq.s32.totalorder %v287, %v294
        %vm308 = vcmp.eq.s32.totalorder %v288, %v294
        %vm309 = vcmp.eq.s32.totalorder %v289, %v294
        %vm310 = vcmp.eq.s32.totalorder %v290, %v294
        %v311 = vsel %vm295, 1, 0
        %v312 = vsel %vm296, 1, 0
        %v313 = vsel %vm297, 1, 0
        %v314 = vsel %vm298, 1, 0
        %v315 = vsel %vm299, 1, 0
        %v316 = vsel %vm300, 1, 0
        %v317 = vsel %vm301, 1, 0
        %v318 = vsel %vm302, 1, 0
        %v319 = vsel %vm303, 1, 0
        %v320 = vsel %vm304, 1, 0
        %v321 = vsel %vm305, 1, 0
        %v322 = vsel %vm306, 1, 0
        %v323 = vsel %vm307, 1, 0
        %v324 = vsel %vm308, 1, 0
        %v325 = vsel %vm309, 1, 0
        %v326 = vsel %vm310, 1, 0
        %v327 = vcvt.s32.f32 %v311
        %v328 = vcvt.s32.f32 %v312
        %v329 = vcvt.s32.f32 %v313
        %v330 = vcvt.s32.f32 %v314
        %v331 = vcvt.s32.f32 %v315
        %v332 = vcvt.s32.f32 %v316
        %v333 = vcvt.s32.f32 %v317
        %v334 = vcvt.s32.f32 %v318
        %v335 = vcvt.s32.f32 %v319
        %v336 = vcvt.s32.f32 %v320
        %v337 = vcvt.s32.f32 %v321
        %v338 = vcvt.s32.f32 %v322
        %v339 = vcvt.s32.f32 %v323
        %v340 = vcvt.s32.f32 %v324
        %v341 = vcvt.s32.f32 %v325
        %v342 = vcvt.s32.f32 %v326
        %v343 = vlaneseq
        %v344 = vshrl.u32 %v343, 7
        %v345 = vsub.s32 0, %v344
        %v346 = vrot.slane %v273, %v345
        %vm347 = vcmp.eq.s32.totalorder %v275, %v346
        %vm348 = vcmp.eq.s32.totalorder %v276, %v346
        %vm349 = vcmp.eq.s32.totalorder %v277, %v346
        %vm350 = vcmp.eq.s32.totalorder %v278, %v346
        %vm351 = vcmp.eq.s32.totalorder %v279, %v346
        %vm352 = vcmp.eq.s32.totalorder %v280, %v346
        %vm353 = vcmp.eq.s32.totalorder %v281, %v346
        %vm354 = vcmp.eq.s32.totalorder %v282, %v346
        %vm355 = vcmp.eq.s32.totalorder %v283, %v346
        %vm356 = vcmp.eq.s32.totalorder %v284, %v346
        %vm357 = vcmp.eq.s32.totalorder %v285, %v346
        %vm358 = vcmp.eq.s32.totalorder %v286, %v346
        %vm359 = vcmp.eq.s32.totalorder %v287, %v346
        %vm360 = vcmp.eq.s32.totalorder %v288, %v346
        %vm361 = vcmp.eq.s32.totalorder %v289, %v346
        %vm362 = vcmp.eq.s32.totalorder %v290, %v346
        %v363 = vsel %vm347, 1, 0
        %v364 = vsel %vm348, 1, 0
        %v365 = vsel %vm349, 1, 0
        %v366 = vsel %vm350, 1, 0
        %v367 = vsel %vm351, 1, 0
        %v368 = vsel %vm352, 1, 0
        %v369 = vsel %vm353, 1, 0
        %v370 = vsel %vm354, 1, 0
        %v371 = vsel %vm355, 1, 0
        %v372 = vsel %vm356, 1, 0
        %v373 = vsel %vm357, 1, 0
        %v374 = vsel %vm358, 1, 0
        %v375 = vsel %vm359, 1, 0
        %v376 = vsel %vm360, 1, 0
        %v377 = vsel %vm361, 1, 0
        %v378 = vsel %vm362, 1, 0
        %v379 = vcvt.s32.f32 %v363
        %v380 = vcvt.s32.f32 %v364
        %v381 = vcvt.s32.f32 %v365
        %v382 = vcvt.s32.f32 %v366
        %v383 = vcvt.s32.f32 %v367
        %v384 = vcvt.s32.f32 %v368
        %v385 = vcvt.s32.f32 %v369
        %v386 = vcvt.s32.f32 %v370
        %v387 = vcvt.s32.f32 %v371
        %v388 = vcvt.s32.f32 %v372
        %v389 = vcvt.s32.f32 %v373
        %v390 = vcvt.s32.f32 %v374
        %v391 = vcvt.s32.f32 %v375
        %v392 = vcvt.s32.f32 %v376
        %v393 = vcvt.s32.f32 %v377
        %v394 = vcvt.s32.f32 %v378
        %v395 = vld [vmem:[#allocation7] sm:$0xff]
        %v396 = vld [vmem:[#allocation7 + $0x8] sm:$0xff]
        %v397 = vld [vmem:[#allocation7 + $0x10] sm:$0xff]
        %v398 = vld [vmem:[#allocation7 + $0x18] sm:$0xff]
        %v399 = vld [vmem:[#allocation7 + $0x20] sm:$0xff]
        %v400 = vld [vmem:[#allocation7 + $0x28] sm:$0xff]
        %v401 = vld [vmem:[#allocation7 + $0x30] sm:$0xff]
        %402 = vmatprep.subr.mxu0 0.0
        %403 = vmatpush1.msra.mxu0 %v342
        %404 = vmatprep.subr.mxu0 0.0
        %405 = vmatpush1.msra.mxu0 %v341
        %406 = vmatprep.subr.mxu0 0.0
        %407 = vmatpush1.msra.mxu0 %v340
        %408 = vmatprep.subr.mxu0 0.0
        %409 = vmatpush1.msra.mxu0 %v339
        %410 = vmatprep.subr.mxu0 0.0
        %411 = vmatpush1.msra.mxu0 %v338
        %412 = vmatprep.subr.mxu0 0.0
        %413 = vmatpush1.msra.mxu0 %v337
        %414 = vmatprep.subr.mxu0 0.0
        %415 = vmatpush1.msra.mxu0 %v336
        %416 = vmatprep.subr.mxu0 0.0
        %417 = vmatpush1.msra.mxu0 %v335
        %418 = vmatprep.subr.mxu0 0.0
        %419 = vmatpush1.msra.mxu0 %v334
        %420 = vmatprep.subr.mxu0 0.0
        %421 = vmatpush1.msra.mxu0 %v333
        %422 = vmatprep.subr.mxu0 0.0
        %423 = vmatpush1.msra.mxu0 %v332
        %424 = vmatprep.subr.mxu0 0.0
        %425 = vmatpush1.msra.mxu0 %v331
        %426 = vmatprep.subr.mxu0 0.0
        %427 = vmatpush1.msra.mxu0 %v330
        %428 = vmatprep.subr.mxu0 0.0
        %429 = vmatpush1.msra.mxu0 %v329
        %430 = vmatprep.subr.mxu0 0.0
        %431 = vmatpush1.msra.mxu0 %v328
        %432 = vmatprep.subr.mxu0 0.0
        %433 = vmatpush1.msra.mxu0 %v327
        %434 = vmatprep.subr.mxu0 0.0
        %435 = vmatpush2.msra.mxu0 0.0
        %436 = vmatprep.subr.mxu0 0.0
        %437 = vmatpush2.msra.mxu0 0.0
        %438 = vmatprep.subr.mxu0 0.0
        %439 = vmatpush2.msra.mxu0 0.0
        %440 = vmatprep.subr.mxu0 0.0
        %441 = vmatpush2.msra.mxu0 0.0
        %442 = vmatprep.subr.mxu0 0.0
        %443 = vmatpush2.msra.mxu0 0.0
        %444 = vmatprep.subr.mxu0 0.0
        %445 = vmatpush2.msra.mxu0 0.0
        %446 = vmatprep.subr.mxu0 0.0
        %447 = vmatpush2.msra.mxu0 0.0
        %448 = vmatprep.subr.mxu0 0.0
        %449 = vmatpush2.msra.mxu0 0.0
        %450 = vmatprep.subr.mxu0 0.0
        %451 = vmatpush2.msra.mxu0 0.0
        %452 = vmatprep.subr.mxu0 0.0
        %453 = vmatpush2.msra.mxu0 0.0
        %454 = vmatprep.subr.mxu0 0.0
        %455 = vmatpush2.msra.mxu0 0.0
        %456 = vmatprep.subr.mxu0 0.0
        %457 = vmatpush2.msra.mxu0 0.0
        %458 = vmatprep.subr.mxu0 0.0
        %459 = vmatpush2.msra.mxu0 0.0
        %460 = vmatprep.subr.mxu0 0.0
        %461 = vmatpush2.msra.mxu0 0.0
        %462 = vmatprep.subr.mxu0 0.0
        %463 = vmatpush2.msra.mxu0 0.0
        %464 = vmatprep.subr.mxu0 0.0
        %465 = vmatpush2.msra.mxu0 0.0
        %466 = vmatprep.mubr.f32.mxu0 0.0
        %467 = vmatmul.mubr.f32.gmra.mxu0 %v395
        %v468 = vpop.f32.mrf.mxu0
        %v469 = vadd.f32 0.0, %v468
        %v470 = vpop.f32.mrf.mxu0
        %471 = vmatprep.mubr.f32.mxu0 0.0
        %472 = vmatmul.mubr.f32.gmra.mxu0 %v396
        %v473 = vpop.f32.mrf.mxu0
        %v474 = vadd.f32 0.0, %v473
        %v475 = vpop.f32.mrf.mxu0
        %476 = vmatprep.mubr.f32.mxu0 0.0
        %477 = vmatmul.mubr.f32.gmra.mxu0 %v397
        %v478 = vpop.f32.mrf.mxu0
        %v479 = vadd.f32 0.0, %v478
        %v480 = vpop.f32.mrf.mxu0
        %481 = vmatprep.mubr.f32.mxu0 0.0
        %482 = vmatmul.mubr.f32.gmra.mxu0 %v398
        %v483 = vpop.f32.mrf.mxu0
        %v484 = vadd.f32 0.0, %v483
        %v485 = vpop.f32.mrf.mxu0
        %486 = vmatprep.mubr.f32.mxu0 0.0
        %487 = vmatmul.mubr.f32.gmra.mxu0 %v399
        %v488 = vpop.f32.mrf.mxu0
        %v489 = vadd.f32 0.0, %v488
        %v490 = vpop.f32.mrf.mxu0
        %491 = vmatprep.mubr.f32.mxu0 0.0
        %492 = vmatmul.mubr.f32.gmra.mxu0 %v400
        %v493 = vpop.f32.mrf.mxu0
        %v494 = vadd.f32 0.0, %v493
        %v495 = vpop.f32.mrf.mxu0
        %496 = vmatprep.mubr.f32.mxu0 0.0
        %497 = vmatmul.mubr.f32.gmra.mxu0 %v401
        %v498 = vpop.f32.mrf.mxu0
        %v499 = vadd.f32 0.0, %v498
        %v500 = vpop.f32.mrf.mxu0
        %501 = vdwg.mxu0
        %v502 = vld [vmem:[#allocation8] sm:$0xff]
        %v503 = vld [vmem:[#allocation8 + $0x8] sm:$0xff]
        %v504 = vld [vmem:[#allocation8 + $0x10] sm:$0xff]
        %v505 = vld [vmem:[#allocation8 + $0x18] sm:$0xff]
        %v506 = vld [vmem:[#allocation8 + $0x20] sm:$0xff]
        %v507 = vld [vmem:[#allocation8 + $0x28] sm:$0xff]
        %v508 = vld [vmem:[#allocation8 + $0x30] sm:$0xff]
        %509 = vmatprep.subr.mxu0 0.0
        %510 = vmatpush1.msra.mxu0 %v394
        %511 = vmatprep.subr.mxu0 0.0
        %512 = vmatpush1.msra.mxu0 %v393
        %513 = vmatprep.subr.mxu0 0.0
        %514 = vmatpush1.msra.mxu0 %v392
        %515 = vmatprep.subr.mxu0 0.0
        %516 = vmatpush1.msra.mxu0 %v391
        %517 = vmatprep.subr.mxu0 0.0
        %518 = vmatpush1.msra.mxu0 %v390
        %519 = vmatprep.subr.mxu0 0.0
        %520 = vmatpush1.msra.mxu0 %v389
        %521 = vmatprep.subr.mxu0 0.0
        %522 = vmatpush1.msra.mxu0 %v388
        %523 = vmatprep.subr.mxu0 0.0
        %524 = vmatpush1.msra.mxu0 %v387
        %525 = vmatprep.subr.mxu0 0.0
        %526 = vmatpush1.msra.mxu0 %v386
        %527 = vmatprep.subr.mxu0 0.0
        %528 = vmatpush1.msra.mxu0 %v385
        %529 = vmatprep.subr.mxu0 0.0
        %530 = vmatpush1.msra.mxu0 %v384
        %531 = vmatprep.subr.mxu0 0.0
        %532 = vmatpush1.msra.mxu0 %v383
        %533 = vmatprep.subr.mxu0 0.0
        %534 = vmatpush1.msra.mxu0 %v382
        %535 = vmatprep.subr.mxu0 0.0
        %536 = vmatpush1.msra.mxu0 %v381
        %537 = vmatprep.subr.mxu0 0.0
        %538 = vmatpush1.msra.mxu0 %v380
        %539 = vmatprep.subr.mxu0 0.0
        %540 = vmatpush1.msra.mxu0 %v379
        %541 = vmatprep.subr.mxu0 0.0
        %542 = vmatpush2.msra.mxu0 0.0
        %543 = vmatprep.subr.mxu0 0.0
        %544 = vmatpush2.msra.mxu0 0.0
        %545 = vmatprep.subr.mxu0 0.0
        %546 = vmatpush2.msra.mxu0 0.0
        %547 = vmatprep.subr.mxu0 0.0
        %548 = vmatpush2.msra.mxu0 0.0
        %549 = vmatprep.subr.mxu0 0.0
        %550 = vmatpush2.msra.mxu0 0.0
        %551 = vmatprep.subr.mxu0 0.0
        %552 = vmatpush2.msra.mxu0 0.0
        %553 = vmatprep.subr.mxu0 0.0
        %554 = vmatpush2.msra.mxu0 0.0
        %555 = vmatprep.subr.mxu0 0.0
        %556 = vmatpush2.msra.mxu0 0.0
        %557 = vmatprep.subr.mxu0 0.0
        %558 = vmatpush2.msra.mxu0 0.0
        %559 = vmatprep.subr.mxu0 0.0
        %560 = vmatpush2.msra.mxu0 0.0
        %561 = vmatprep.subr.mxu0 0.0
        %562 = vmatpush2.msra.mxu0 0.0
        %563 = vmatprep.subr.mxu0 0.0
        %564 = vmatpush2.msra.mxu0 0.0
        %565 = vmatprep.subr.mxu0 0.0
        %566 = vmatpush2.msra.mxu0 0.0
        %567 = vmatprep.subr.mxu0 0.0
        %568 = vmatpush2.msra.mxu0 0.0
        %569 = vmatprep.subr.mxu0 0.0
        %570 = vmatpush2.msra.mxu0 0.0
        %571 = vmatprep.subr.mxu0 0.0
        %572 = vmatpush2.msra.mxu0 0.0
        %573 = vmatprep.mubr.f32.mxu0 0.0
        %574 = vmatmul.mubr.f32.gmra.mxu0 %v502
        %v575 = vpop.f32.mrf.mxu0
        %v576 = vadd.f32 0.0, %v575
        %v577 = vpop.f32.mrf.mxu0
        %578 = vmatprep.mubr.f32.mxu0 0.0
        %579 = vmatmul.mubr.f32.gmra.mxu0 %v503
        %v580 = vpop.f32.mrf.mxu0
        %v581 = vadd.f32 0.0, %v580
        %v582 = vpop.f32.mrf.mxu0
        %583 = vmatprep.mubr.f32.mxu0 0.0
        %584 = vmatmul.mubr.f32.gmra.mxu0 %v504
        %v585 = vpop.f32.mrf.mxu0
        %v586 = vadd.f32 0.0, %v585
        %v587 = vpop.f32.mrf.mxu0
        %588 = vmatprep.mubr.f32.mxu0 0.0
        %589 = vmatmul.mubr.f32.gmra.mxu0 %v505
        %v590 = vpop.f32.mrf.mxu0
        %v591 = vadd.f32 0.0, %v590
        %v592 = vpop.f32.mrf.mxu0
        %593 = vmatprep.mubr.f32.mxu0 0.0
        %594 = vmatmul.mubr.f32.gmra.mxu0 %v506
        %v595 = vpop.f32.mrf.mxu0
        %v596 = vadd.f32 0.0, %v595
        %v597 = vpop.f32.mrf.mxu0
        %598 = vmatprep.mubr.f32.mxu0 0.0
        %599 = vmatmul.mubr.f32.gmra.mxu0 %v507
        %v600 = vpop.f32.mrf.mxu0
        %v601 = vadd.f32 0.0, %v600
        %v602 = vpop.f32.mrf.mxu0
        %603 = vmatprep.mubr.f32.mxu0 0.0
        %604 = vmatmul.mubr.f32.gmra.mxu0 %v508
        %v605 = vpop.f32.mrf.mxu0
        %v606 = vadd.f32 0.0, %v605
        %v607 = vpop.f32.mrf.mxu0
        %608 = vdwg.mxu0
        %v609 = vmul.f32 %v469, %v576
        %v610 = vmul.f32 %v474, %v581
        %v611 = vmul.f32 %v479, %v586
        %v612 = vmul.f32 %v484, %v591
        %v613 = vmul.f32 %v489, %v596
        %v614 = vmul.f32 %v494, %v601
        %v615 = vmul.f32 %v499, %v606
        %v616 = vadd.f32 %v609, %v610
        %v617 = vadd.f32 %v616, %v611
        %v618 = vadd.f32 %v617, %v612
        %v619 = vadd.f32 %v618, %v613
        %v620 = vadd.f32 %v619, %v614
        %v621 = vadd.f32 %v620, %v615
        %v622 = vrot.slane %v621, 4
        %v623 = vadd.f32 %v621, %v622
        %v624 = vrot.slane %v623, 2
        %v625 = vadd.f32 %v623, %v624
        %v626 = vrot.slane %v625, 1
        %v627 = vadd.f32 %v625, %v626
        %628 = vst [vmem:[%s271] sm:$0x1] %v627
        %s629 = sand.u32 %s127, 1
        %s630 = scalar_lea.sflag [#allocation4], %s629
        %s631 = sand.u32 %s127, 1
        %s632 = scalar_lea.vmem [#allocation10], %s631
        // Predicated region
        $region53: #{tpu_custom_call.1} parent=35 // pred_check
          %p633 = pneg %p137
        $region54: #{tpu_custom_call.1} parent=35 // pred_check_branch
          %635 = sbr.rel (%p633) target = $region56
        $region55: #{tpu_custom_call.1} parent=35 // pred_region
          %s637 = ssub.s32 16, 16
          %638 = vsyncadd %s630, %s637
          %s639 = smul.addr %s25, 16
          %s640 = scalar_lea.hbm %s4, %s639
          %s642 = sshll.u32 %s632, 4
          %s643 = int_to_ptr.vmem [resolvable:$true] %s642
          %645 = dma.vmem_to_hbm [thread:$0]  %s643, 16, %s640, %s630
        $region56: #{tpu_custom_call.1} parent=35 // pred_fallthru
          _
      $region36: #{tpu_custom_call.1} parent=5 // pred_fallthru
        _
      %p646 = scmp.le.s32.totalorder 2, %s20
      // Predicated region
      $region57: #{tpu_custom_call.1} parent=5 // pred_check
        %p647 = pneg %p646
      $region58: #{tpu_custom_call.1} parent=5 // pred_check_branch
        %649 = sbr.rel (%p647) target = $region60
      $region59: #{tpu_custom_call.1} parent=5 // pred_region
        %s650 = ssub.s32 %s20, 2
        // Predicated region
        $region61: #{tpu_custom_call.1} parent=59 // pred_check
          %p651 = pneg %p143
        $region62: #{tpu_custom_call.1} parent=59 // pred_check_branch
          %653 = sbr.rel (%p651) target = $region64
        $region63: #{tpu_custom_call.1} parent=59 // pred_region
          %s654 = sand.u32 %s128, 1
          %s655 = scalar_lea.sflag [#allocation4], %s654
          %s656 = sand.u32 %s128, 1
          %s657 = scalar_lea.vmem [#allocation10], %s656
          %658 = dma.done %s655, 16
        $region64: #{tpu_custom_call.1} parent=59 // pred_fallthru
          _
      $region60: #{tpu_custom_call.1} parent=5 // pred_fallthru
        _
    $region6: #{tpu_custom_call.1} parent=1 // loop_footer
      %s24 = sadd.s32 1, %s20
    $region7: #{tpu_custom_call.1} parent=1 // loop_footer_branch
      %19 = sbr.rel target = $region3
    $region8: #{tpu_custom_call.1} parent=1 // loop_exit
      _
    %659 = vsyncpa [#allocation3], 1
    %s660 = scalar_lea.sflag [#allocation3], 1
    %661 = vsyncpa %s660, 1
    %662 = vsyncpa [#allocation6], 1
    %s663 = scalar_lea.sflag [#allocation6], 1
    %664 = vsyncpa %s663, 1
    %665 = vsyncpa [#allocation9], 1
    %666 = vsyncpa [#allocation4], 1
    %s667 = scalar_lea.sflag [#allocation4], 1
    %668 = vsyncpa %s667, 1

</llo_original>
